<compile_context>
chip_gen: v7x
topology: tpu7x:2x2x1
jax: 0.10.0
libtpu: 0.0.40
codegen_flags: <defaults>
</compile_context>

<pallas_src>
import functools
import math

import jax
import jax.numpy as jnp
from jax.experimental import pallas as pl
from jax.experimental.pallas import tpu as pltpu


def _flash_sdpa_kernel(q_ref, k_ref, v_ref, o_ref,
                       q_sc, m_sc, l_sc, acc_sc, *, mxu_dtype):
    kv_idx = pl.program_id(1)

    @pl.when(kv_idx == 0)
    def _init():
        d_k = q_ref.shape[-1]
        scale = 1.0 / math.sqrt(d_k)
        # Q is resident across the kv axis: scale it once and stage it in the
        # MXU feed dtype, instead of re-scaling / re-casting every kv step.
        q_sc[...] = (q_ref[...] * scale).astype(mxu_dtype)
        m_sc[...] = jnp.full_like(m_sc, -jnp.inf)
        l_sc[...] = jnp.zeros_like(l_sc)
        acc_sc[...] = jnp.zeros_like(acc_sc)

    # scores = Q @ K^T without materializing K^T: contract the last dim of
    # both operands (no XLU transpose of K). bf16 operands feed the MXU at
    # native rate on v5e/v6e/v7x; accumulation is f32.
    s = jax.lax.dot_general(
        q_sc[...], k_ref[...].astype(mxu_dtype),
        dimension_numbers=(((1,), (1,)), ((), ())),
        preferred_element_type=jnp.float32,
    )  # [tq, tkv] f32

    # Online (running) softmax update — all state kept in f32.
    m_prev = m_sc[...]
    m_new = jnp.maximum(m_prev, jnp.max(s, axis=-1, keepdims=True))
    alpha = jnp.exp(m_prev - m_new)
    p = jnp.exp(s - m_new)  # unnormalized probabilities, in [0, 1]
    l_sc[...] = alpha * l_sc[...] + jnp.sum(p, axis=-1, keepdims=True)
    acc_sc[...] = alpha * acc_sc[...] + jnp.dot(
        p.astype(mxu_dtype), v_ref[...].astype(mxu_dtype),
        preferred_element_type=jnp.float32)
    m_sc[...] = m_new

    @pl.when(kv_idx == pl.num_programs(1) - 1)
    def _finalize():
        # Exact deferred normalization (once per q tile, on [tq, d_v] only).
        o_ref[...] = (acc_sc[...] / l_sc[...]).astype(o_ref.dtype)


def scaled_dot_product_attention(Q, K, V, *, block_q=512, block_kv=512,
                                 mxu_dtype=jnp.bfloat16):
    seq_len, d_k = Q.shape
    kv_len, d_v = V.shape
    assert K.shape == (kv_len, d_k)

    tq = min(seq_len, block_q)
    # v7x has 2 TensorCores: keep the "parallel" q axis at >= 2 tiles when the
    # sequence allows it (8-sublane aligned), so both cores get work.
    if seq_len // tq < 2:
        half = seq_len // 2
        if half >= 8 and half % 8 == 0:
            tq = half
    tkv = min(kv_len, block_kv)
    assert seq_len % tq == 0 and kv_len % tkv == 0, "sequence must tile evenly"
    grid = (seq_len // tq, kv_len // tkv)

    # Rough VMEM budget: double-buffered K/V and Q/out tiles + scratch + the
    # [tq, tkv] scores temporaries, with 2x margin. Used to raise the scoped
    # VMEM limit (v5e default is 16 MiB) while staying inside v7x's 64 MiB.
    est_bytes = 4 * (4 * tkv * (d_k + d_v) + 4 * tq * (d_k + d_v)
                     + 2 * tq * tkv + tq * (d_k + d_v + 2))
    vmem_limit = int(min(64 * 1024 * 1024,
                         max(32 * 1024 * 1024, 2 * est_bytes)))

    kernel = functools.partial(_flash_sdpa_kernel, mxu_dtype=mxu_dtype)
    return pl.pallas_call(
        kernel,
        out_shape=jax.ShapeDtypeStruct((seq_len, d_v), Q.dtype),
        grid=grid,
        in_specs=[
            pl.BlockSpec((tq, d_k), lambda qi, ki: (qi, 0)),
            pl.BlockSpec((tkv, d_k), lambda qi, ki: (ki, 0)),
            pl.BlockSpec((tkv, d_v), lambda qi, ki: (ki, 0)),
        ],
        out_specs=pl.BlockSpec((tq, d_v), lambda qi, ki: (qi, 0)),
        scratch_shapes=[
            pltpu.VMEM((tq, d_k), mxu_dtype),    # scaled Q, staged for the MXU
            pltpu.VMEM((tq, 1), jnp.float32),    # running max m_i
            pltpu.VMEM((tq, 1), jnp.float32),    # running sum l_i
            pltpu.VMEM((tq, d_v), jnp.float32),  # output accumulator
        ],
        compiler_params=pltpu.CompilerParams(
            dimension_semantics=("parallel", "arbitrary"),
            vmem_limit_bytes=vmem_limit,
        ),
    )(Q, K, V)


def _reference(Q, K, V):
    d_k = Q.shape[-1]
    scores = (Q @ K.T) / math.sqrt(d_k)
    weights = jax.nn.softmax(scores, axis=-1)
    return weights @ V


if __name__ == "__main__":
    d_k = d_v = 64
    seq_length = 32

    key = jax.random.PRNGKey(0)
    kq, kk, kv = jax.random.split(key, 3)
    Q = jax.random.normal(kq, (seq_length, d_k), dtype=jnp.float32)
    K = jax.random.normal(kk, (seq_length, d_k), dtype=jnp.float32)
    V = jax.random.normal(kv, (seq_length, d_v), dtype=jnp.float32)

    out = jax.block_until_ready(scaled_dot_product_attention(Q, K, V))
    ref = _reference(Q, K, V)

    assert out.shape == (seq_length, d_v)
    # Tolerance reflects bf16 MXU operands (input rounding ~2^-9 through the
    # two matmuls); softmax state/accumulation are f32 and the final
    # normalization is exact.
    max_err = float(jnp.max(jnp.abs(out - ref)))
    assert jnp.allclose(out, ref, atol=4e-2, rtol=4e-2), max_err

    print("KERNEL_OK")
</pallas_src>

<mosaic_0001>
module attributes {stable_mosaic.version = 11 : i64} {
  func.func @_flash_sdpa_kernel(%arg0: i32, %arg1: i32, %arg2: memref<16x64xf32, #tpu.memory_space<vmem>>, %arg3: memref<32x64xf32, #tpu.memory_space<vmem>>, %arg4: memref<32x64xf32, #tpu.memory_space<vmem>>, %arg5: memref<16x64xf32, #tpu.memory_space<vmem>>, %arg6: memref<16x64xbf16, #tpu.memory_space<vmem>>, %arg7: memref<16x1xf32, #tpu.memory_space<vmem>>, %arg8: memref<16x1xf32, #tpu.memory_space<vmem>>, %arg9: memref<16x64xf32, #tpu.memory_space<vmem>>) attributes {dimension_semantics = [#tpu.dimension_semantics<parallel>, #tpu.dimension_semantics<arbitrary>], iteration_bounds = array<i64: 2, 1>, scalar_prefetch = 0 : i64, scratch_operands = 4 : i64, tpu.core_type = #tpu.core_type<tc>, window_params = [{transform_indices = @transform_0, window_bounds = array<i64: 16, 64>}, {transform_indices = @transform_1, window_bounds = array<i64: 32, 64>}, {transform_indices = @transform_2, window_bounds = array<i64: 32, 64>}, {transform_indices = @transform_3, window_bounds = array<i64: 16, 64>}]} {
    %c0_i32 = arith.constant 0 : i32
    %0 = arith.cmpi eq, %arg1, %c0_i32 : i32
    %1 = arith.extui %0 : i1 to i32
    %c0_i32_0 = arith.constant 0 : i32
    %2 = arith.cmpi ne, %1, %c0_i32_0 : i32
    scf.if %2 {
      %c0_23 = arith.constant 0 : index
      %c0_24 = arith.constant 0 : index
      %35 = vector.load %arg2[%c0_23, %c0_24] : memref<16x64xf32, #tpu.memory_space<vmem>>, vector<16x64xf32>
      %cst_25 = arith.constant 1.250000e-01 : f32
      %36 = vector.broadcast %cst_25 : f32 to vector<16x64xf32>
      %37 = arith.mulf %35, %36 : vector<16x64xf32>
      %38 = arith.truncf %37 : vector<16x64xf32> to vector<16x64xbf16>
      %c0_26 = arith.constant 0 : index
      %c0_27 = arith.constant 0 : index
      %39 = vector.load %arg6[%c0_26, %c0_27] : memref<16x64xbf16, #tpu.memory_space<vmem>>, vector<16x64xbf16>
      tpu.vector_store %arg6[%c0_26, %c0_27], %38 {strides = array<i32>} : memref<16x64xbf16, #tpu.memory_space<vmem>>, vector<16x64xbf16>,
      %cst_28 = arith.constant 0xFF800000 : f32
      %40 = vector.broadcast %cst_28 : f32 to vector<16x1xf32>
      %c0_29 = arith.constant 0 : index
      %c0_30 = arith.constant 0 : index
      %41 = vector.load %arg7[%c0_29, %c0_30] : memref<16x1xf32, #tpu.memory_space<vmem>>, vector<16x1xf32>
      tpu.vector_store %arg7[%c0_29, %c0_30], %40 {strides = array<i32>} : memref<16x1xf32, #tpu.memory_space<vmem>>, vector<16x1xf32>,
      %cst_31 = arith.constant 0.000000e+00 : f32
      %42 = vector.broadcast %cst_31 : f32 to vector<16x1xf32>
      %c0_32 = arith.constant 0 : index
      %c0_33 = arith.constant 0 : index
      %43 = vector.load %arg8[%c0_32, %c0_33] : memref<16x1xf32, #tpu.memory_space<vmem>>, vector<16x1xf32>
      tpu.vector_store %arg8[%c0_32, %c0_33], %42 {strides = array<i32>} : memref<16x1xf32, #tpu.memory_space<vmem>>, vector<16x1xf32>,
      %cst_34 = arith.constant 0.000000e+00 : f32
      %44 = vector.broadcast %cst_34 : f32 to vector<16x64xf32>
      %c0_35 = arith.constant 0 : index
      %c0_36 = arith.constant 0 : index
      %45 = vector.load %arg9[%c0_35, %c0_36] : memref<16x64xf32, #tpu.memory_space<vmem>>, vector<16x64xf32>
      tpu.vector_store %arg9[%c0_35, %c0_36], %44 {strides = array<i32>} : memref<16x64xf32, #tpu.memory_space<vmem>>, vector<16x64xf32>,
    } else {
    }
    %c0 = arith.constant 0 : index
    %c0_1 = arith.constant 0 : index
    %3 = vector.load %arg6[%c0, %c0_1] : memref<16x64xbf16, #tpu.memory_space<vmem>>, vector<16x64xbf16>
    %c0_2 = arith.constant 0 : index
    %c0_3 = arith.constant 0 : index
    %4 = vector.load %arg3[%c0_2, %c0_3] : memref<32x64xf32, #tpu.memory_space<vmem>>, vector<32x64xf32>
    %5 = arith.truncf %4 : vector<32x64xf32> to vector<32x64xbf16>
    %cst = arith.constant dense<0.000000e+00> : vector<16x32xf32>
    %6 = tpu.matmul %3, %5, %cst {dimension_numbers = #tpu.dot_dimension_numbers<[1], [1], [0], [0], [0, 0, 1, 0], [], []>} : vector<16x64xbf16>, vector<32x64xbf16>, vector<16x32xf32> -> vector<16x32xf32>
    %c0_4 = arith.constant 0 : index
    %c0_5 = arith.constant 0 : index
    %7 = vector.load %arg7[%c0_4, %c0_5] : memref<16x1xf32, #tpu.memory_space<vmem>>, vector<16x1xf32>
    %cst_6 = arith.constant dense<0xFF800000> : vector<16xf32>
    %8 = vector.multi_reduction <maximumf>, %6, %cst_6 [1] : vector<16x32xf32> to vector<16xf32>
    %9 = vector.shape_cast %8 : vector<16xf32> to vector<16x1xf32>
    %10 = arith.maximumf %7, %9 : vector<16x1xf32>
    %11 = arith.subf %7, %10 : vector<16x1xf32>
    %12 = math.exp %11 : vector<16x1xf32>
    %13 = vector.broadcast %10 : vector<16x1xf32> to vector<16x32xf32>
    %14 = arith.subf %6, %13 : vector<16x32xf32>
    %15 = math.exp %14 : vector<16x32xf32>
    %c0_7 = arith.constant 0 : index
    %c0_8 = arith.constant 0 : index
    %16 = vector.load %arg8[%c0_7, %c0_8] : memref<16x1xf32, #tpu.memory_space<vmem>>, vector<16x1xf32>
    %17 = arith.mulf %12, %16 : vector<16x1xf32>
    %cst_9 = arith.constant dense<0.000000e+00> : vector<16xf32>
    %18 = vector.multi_reduction <add>, %15, %cst_9 [1] : vector<16x32xf32> to vector<16xf32>
    %19 = vector.shape_cast %18 : vector<16xf32> to vector<16x1xf32>
    %20 = arith.addf %17, %19 : vector<16x1xf32>
    %c0_10 = arith.constant 0 : index
    %c0_11 = arith.constant 0 : index
    %21 = vector.load %arg8[%c0_10, %c0_11] : memref<16x1xf32, #tpu.memory_space<vmem>>, vector<16x1xf32>
    tpu.vector_store %arg8[%c0_10, %c0_11], %20 {strides = array<i32>} : memref<16x1xf32, #tpu.memory_space<vmem>>, vector<16x1xf32>,
    %c0_12 = arith.constant 0 : index
    %c0_13 = arith.constant 0 : index
    %22 = vector.load %arg9[%c0_12, %c0_13] : memref<16x64xf32, #tpu.memory_space<vmem>>, vector<16x64xf32>
    %23 = vector.broadcast %12 : vector<16x1xf32> to vector<16x64xf32>
    %24 = arith.mulf %23, %22 : vector<16x64xf32>
    %25 = arith.truncf %15 : vector<16x32xf32> to vector<16x32xbf16>
    %c0_14 = arith.constant 0 : index
    %c0_15 = arith.constant 0 : index
    %26 = vector.load %arg4[%c0_14, %c0_15] : memref<32x64xf32, #tpu.memory_space<vmem>>, vector<32x64xf32>
    %27 = arith.truncf %26 : vector<32x64xf32> to vector<32x64xbf16>
    %cst_16 = arith.constant dense<0.000000e+00> : vector<16x64xf32>
    %28 = tpu.matmul %25, %27, %cst_16 {dimension_numbers = #tpu.dot_dimension_numbers<[1], [0], [0], [1], [0, 0, 1, 1], [], []>} : vector<16x32xbf16>, vector<32x64xbf16>, vector<16x64xf32> -> vector<16x64xf32>
    %29 = arith.addf %24, %28 : vector<16x64xf32>
    %c0_17 = arith.constant 0 : index
    %c0_18 = arith.constant 0 : index
    %30 = vector.load %arg9[%c0_17, %c0_18] : memref<16x64xf32, #tpu.memory_space<vmem>>, vector<16x64xf32>
    tpu.vector_store %arg9[%c0_17, %c0_18], %29 {strides = array<i32>} : memref<16x64xf32, #tpu.memory_space<vmem>>, vector<16x64xf32>,
    %c0_19 = arith.constant 0 : index
    %c0_20 = arith.constant 0 : index
    %31 = vector.load %arg7[%c0_19, %c0_20] : memref<16x1xf32, #tpu.memory_space<vmem>>, vector<16x1xf32>
    tpu.vector_store %arg7[%c0_19, %c0_20], %10 {strides = array<i32>} : memref<16x1xf32, #tpu.memory_space<vmem>>, vector<16x1xf32>,
    %c0_i32_21 = arith.constant 0 : i32
    %32 = arith.cmpi eq, %arg1, %c0_i32_21 : i32
    %33 = arith.extui %32 : i1 to i32
    %c0_i32_22 = arith.constant 0 : i32
    %34 = arith.cmpi ne, %33, %c0_i32_22 : i32
    scf.if %34 {
      %c0_23 = arith.constant 0 : index
      %c0_24 = arith.constant 0 : index
      %35 = vector.load %arg9[%c0_23, %c0_24] : memref<16x64xf32, #tpu.memory_space<vmem>>, vector<16x64xf32>
      %c0_25 = arith.constant 0 : index
      %c0_26 = arith.constant 0 : index
      %36 = vector.load %arg8[%c0_25, %c0_26] : memref<16x1xf32, #tpu.memory_space<vmem>>, vector<16x1xf32>
      %37 = vector.broadcast %36 : vector<16x1xf32> to vector<16x64xf32>
      %38 = arith.divf %35, %37 : vector<16x64xf32>
      %c0_27 = arith.constant 0 : index
      %c0_28 = arith.constant 0 : index
      %39 = vector.load %arg5[%c0_27, %c0_28] : memref<16x64xf32, #tpu.memory_space<vmem>>, vector<16x64xf32>
      tpu.vector_store %arg5[%c0_27, %c0_28], %38 {strides = array<i32>} : memref<16x64xf32, #tpu.memory_space<vmem>>, vector<16x64xf32>,
    } else {
    }
    return
  }
  func.func @transform_0(%arg0: i32, %arg1: i32) -> (i32, i32) {
    %c0_i32 = arith.constant 0 : i32
    %c0_i32_0 = arith.constant 0 : i32
    return %arg0, %c0_i32 : i32, i32
  }
  func.func @transform_1(%arg0: i32, %arg1: i32) -> (i32, i32) {
    %c0_i32 = arith.constant 0 : i32
    %c0_i32_0 = arith.constant 0 : i32
    return %arg1, %c0_i32 : i32, i32
  }
  func.func @transform_2(%arg0: i32, %arg1: i32) -> (i32, i32) {
    %c0_i32 = arith.constant 0 : i32
    %c0_i32_0 = arith.constant 0 : i32
    return %arg1, %c0_i32 : i32, i32
  }
  func.func @transform_3(%arg0: i32, %arg1: i32) -> (i32, i32) {
    %c0_i32 = arith.constant 0 : i32
    %c0_i32_0 = arith.constant 0 : i32
    return %arg0, %c0_i32 : i32, i32
  }
}

</mosaic_0001>

<llo_original>
// kernel: tpu_custom_call.1
$region0: #{tpu_custom_call.1}
  #allocation0 [shape = 'u32[]', space=smem, size = 0x4, offset = 0x4, fixed_abs, tag = 'smem constant byte address 0x4 - core index']
  #allocation1 [shape = 'u32[144,128]{1,0:T(1,128)}', space=vmem, size = 0x12000, scoped, tag = 'internal scratch']
  #allocation2 [shape = 'bf16[16,64]{1,0:T(16,128)(2,1)}', space=vmem, size = 0x1000, scoped, tag = 'scratch operand']
  #allocation3 [shape = 'f32[16,1]{1,0:T(8,128)}', space=vmem, size = 0x2000, scoped, tag = 'scratch operand']
  #allocation4 [shape = 'f32[16,1]{1,0:T(8,128)}', space=vmem, size = 0x2000, scoped, tag = 'scratch operand']
  #allocation5 [shape = 'f32[16,64]{1,0:T(8,128)}', space=vmem, size = 0x2000, scoped, tag = 'scratch operand']
  %s0 = inlined_call_operand.hbm [shape: f32[32,64], index: 0, kind: input, shape index: {}]
  %s1 = inlined_call_operand.hbm [shape: f32[32,64], index: 1, kind: input, shape index: {}]
  %s2 = inlined_call_operand.hbm [shape: f32[32,64], index: 2, kind: input, shape index: {}]
  %s3 = inlined_call_operand.hbm [shape: f32[32,64], index: 3, kind: output, shape index: {}]
  %s4 = sld [smem:[#allocation0]]
  $region65: #{tpu_custom_call.1} parent=0
    _
  %s6 = ssub.s32 1, %s4
  %s7 = scalar_select 0, %s6, %s4
  $region1: #{tpu_custom_call.1} parent=0
    #allocation6 [shape = 'u8[16384]{0}', space=vmem, size = 0x4000, scoped, tag = 'input window, operand 0']
    #allocation7 [shape = 's32[2]{0}', space=sflag, size = 0x8, scoped, tag = 'scoped memory for tpu_custom_call.1']
    #allocation8 [shape = 's32[2]{0}', space=sflag, size = 0x8, scoped, tag = 'scoped memory for tpu_custom_call.1']
    #allocation9 [shape = 'u8[16384]{0}', space=vmem, size = 0x4000, scoped, tag = 'input window, operand 1, single buffered']
    #allocation10 [shape = 's32[1]{0}', space=sflag, size = 0x4, scoped, tag = 'scoped memory for tpu_custom_call.1']
    #allocation11 [shape = 'u8[16384]{0}', space=vmem, size = 0x4000, scoped, tag = 'input window, operand 2, single buffered']
    #allocation12 [shape = 'u8[16384]{0}', space=vmem, size = 0x4000, scoped, tag = 'output window, operand 0']
    %8 = vsyncpa [#allocation7], 0
    %s9 = scalar_lea.sflag [#allocation7], 1
    %10 = vsyncpa %s9, 0
    %11 = vsyncpa [#allocation10], 0
    %12 = vsyncpa [#allocation8], 0
    %s13 = scalar_lea.sflag [#allocation8], 1
    %14 = vsyncpa %s13, 0
    loop: start=0, step=1, limit=4
    $region2: #{tpu_custom_call.1} parent=1 // loop_pre_header
      _
    $region3: #{tpu_custom_call.1} parent=1 // loop_header
      %s16 = sphi 0, %s20
      %p17 = scmp.ge.s32.totalorder %s16, 4
      %s23 = sphi 0, %s35
      %s24 = sphi 0, %s31
      %s25 = sphi 0, %s23
      %s26 = sphi 0, %s24
      %s27 = sphi 0, %s25
      %s28 = sphi 0, %s26
      %s38 = sphi 0, %s40
      %s41 = sphi 0, %s38
      %s42 = sphi 0, %s41
      %s58 = sphi 0, %s42
      %s64 = sphi 0, %s66
      %s67 = sphi 0, %s64
      %s68 = sphi 0, %s67
      %s84 = sphi 0, %s68
      %s90 = sphi 0, %s92
      %s93 = sphi 0, %s90
      %s94 = sphi 0, %s93
      %s110 = sphi 0, %s94
      %s116 = sphi 0, %s118
      %s119 = sphi 0, %s116
      %s120 = sphi 0, %s119
      %s136 = sphi 0, %s120
    $region4: #{tpu_custom_call.1} parent=1 // loop_header_branch
      %19 = sbr.rel (%p17) target = $region8
    $region5: #{tpu_custom_call.1} parent=1 // loop_body
      %s21 = ssub.s32 %s16, 1
      %s22 = ssub.s32 %s16, 2
      %s29 = sadd.s32 1, %s24
      %p30 = scmp.ge.s32.totalorder %s29, 1
      %s31 = scalar_select %p30, 0, %s29
      %s32 = sadd.s32 1, %s23
      %s33 = scalar_select %p30, %s32, %s23
      %p34 = scmp.ge.s32.totalorder %s33, 2
      %s35 = scalar_select %p34, 0, %s33
      %s36 = ssub.s32 %s23, %s35
      %p37 = scmp.eq.s32.totalorder %s36, 0
      %s39 = sadd.s32 %s38, 1
      %s40 = scalar_select %p37, %s38, %s39
      %p43 = pneg %p37
      %p44 = scmp.eq.s32.totalorder %s16, 1
      %p45 = por %p43, %p44
      %p46 = scmp.ne.s32.totalorder %s38, %s41
      %p47 = scmp.eq.s32.totalorder %s16, 0
      %p48 = por %p46, %p47
      %p49 = scmp.ne.s32.totalorder %s38, %s41
      %p50 = scmp.eq.s32.totalorder %s21, 1
      %p51 = por %p49, %p50
      %p52 = scmp.ne.s32.totalorder %s41, %s42
      %p53 = scmp.eq.s32.totalorder %s21, 0
      %p54 = por %p52, %p53
      %p55 = scmp.ne.s32.totalorder %s41, %s42
      %p56 = scmp.eq.s32.totalorder %s22, 1
      %p57 = por %p55, %p56
      %p59 = scmp.ne.s32.totalorder %s42, %s58
      %p60 = scmp.eq.s32.totalorder %s22, 0
      %p61 = por %p59, %p60
      %s62 = ssub.s32 %s24, %s31
      %p63 = scmp.eq.s32.totalorder %s62, 0
      %s65 = sadd.s32 %s64, 1
      %s66 = scalar_select %p63, %s64, %s65
      %p69 = pneg %p63
      %p70 = scmp.eq.s32.totalorder %s16, 1
      %p71 = por %p69, %p70
      %p72 = scmp.ne.s32.totalorder %s64, %s67
      %p73 = scmp.eq.s32.totalorder %s16, 0
      %p74 = por %p72, %p73
      %p75 = scmp.ne.s32.totalorder %s64, %s67
      %p76 = scmp.eq.s32.totalorder %s21, 1
      %p77 = por %p75, %p76
      %p78 = scmp.ne.s32.totalorder %s67, %s68
      %p79 = scmp.eq.s32.totalorder %s21, 0
      %p80 = por %p78, %p79
      %p81 = scmp.ne.s32.totalorder %s67, %s68
      %p82 = scmp.eq.s32.totalorder %s22, 1
      %p83 = por %p81, %p82
      %p85 = scmp.ne.s32.totalorder %s68, %s84
      %p86 = scmp.eq.s32.totalorder %s22, 0
      %p87 = por %p85, %p86
      %s88 = ssub.s32 %s24, %s31
      %p89 = scmp.eq.s32.totalorder %s88, 0
      %s91 = sadd.s32 %s90, 1
      %s92 = scalar_select %p89, %s90, %s91
      %p95 = pneg %p89
      %p96 = scmp.eq.s32.totalorder %s16, 1
      %p97 = por %p95, %p96
      %p98 = scmp.ne.s32.totalorder %s90, %s93
      %p99 = scmp.eq.s32.totalorder %s16, 0
      %p100 = por %p98, %p99
      %p101 = scmp.ne.s32.totalorder %s90, %s93
      %p102 = scmp.eq.s32.totalorder %s21, 1
      %p103 = por %p101, %p102
      %p104 = scmp.ne.s32.totalorder %s93, %s94
      %p105 = scmp.eq.s32.totalorder %s21, 0
      %p106 = por %p104, %p105
      %p107 = scmp.ne.s32.totalorder %s93, %s94
      %p108 = scmp.eq.s32.totalorder %s22, 1
      %p109 = por %p107, %p108
      %p111 = scmp.ne.s32.totalorder %s94, %s110
      %p112 = scmp.eq.s32.totalorder %s22, 0
      %p113 = por %p111, %p112
      %s114 = ssub.s32 %s23, %s35
      %p115 = scmp.eq.s32.totalorder %s114, 0
      %s117 = sadd.s32 %s116, 1
      %s118 = scalar_select %p115, %s116, %s117
      %p121 = pneg %p115
      %p122 = scmp.eq.s32.totalorder %s16, 1
      %p123 = por %p121, %p122
      %p124 = scmp.ne.s32.totalorder %s116, %s119
      %p125 = scmp.eq.s32.totalorder %s16, 0
      %p126 = por %p124, %p125
      %p127 = scmp.ne.s32.totalorder %s116, %s119
      %p128 = scmp.eq.s32.totalorder %s21, 1
      %p129 = por %p127, %p128
      %p130 = scmp.ne.s32.totalorder %s119, %s120
      %p131 = scmp.eq.s32.totalorder %s21, 0
      %p132 = por %p130, %p131
      %p133 = scmp.ne.s32.totalorder %s119, %s120
      %p134 = scmp.eq.s32.totalorder %s22, 1
      %p135 = por %p133, %p134
      %p137 = scmp.ne.s32.totalorder %s120, %s136
      %p138 = scmp.eq.s32.totalorder %s22, 0
      %p139 = por %p137, %p138
      %p140 = scmp.le.s32.totalorder 1, %s16
      %p141 = scmp.lt.s32.totalorder %s16, 3
      %p142 = pnand %p140, %p141
      %p143 = pneg %p142
      // Predicated region
      $region9: #{tpu_custom_call.1} parent=5 // pred_check
        _
      $region10: #{tpu_custom_call.1} parent=5 // pred_check_branch
        %145 = sbr.rel (%p142) target = $region12
      $region11: #{tpu_custom_call.1} parent=5 // pred_region
        %s146 = ssub.s32 %s16, 1
        // Predicated region
        $region13: #{tpu_custom_call.1} parent=11 // pred_check
          %p147 = pneg %p80
        $region14: #{tpu_custom_call.1} parent=11 // pred_check_branch
          %149 = sbr.rel (%p147) target = $region16
        $region15: #{tpu_custom_call.1} parent=11 // pred_region
          %s150 = smul.u32 4, %s26
          %s152 = ssub.s32 512, 512
          %153 = vsyncadd [#allocation10], %s152
          %s154 = smul.addr %s150, 128
          %s155 = scalar_lea.hbm %s1, %s154
          %s156 = sshll.u32 [#allocation9], 4
          %s157 = int_to_ptr.vmem [resolvable:$true] %s156
          %162 = dma.hbm_to_vmem [thread:$0]  %s155, 512, %s157, [#allocation10], 128, 128, 8
        $region16: #{tpu_custom_call.1} parent=11 // pred_fallthru
          _
        // Predicated region
        $region17: #{tpu_custom_call.1} parent=11 // pred_check
          %p163 = pneg %p106
        $region18: #{tpu_custom_call.1} parent=11 // pred_check_branch
          %165 = sbr.rel (%p163) target = $region20
        $region19: #{tpu_custom_call.1} parent=11 // pred_region
          %s166 = smul.u32 4, %s26
          %s168 = ssub.s32 512, 512
          %169 = vsyncadd [#allocation10], %s168
          %s170 = smul.addr %s166, 128
          %s171 = scalar_lea.hbm %s2, %s170
          %s172 = sshll.u32 [#allocation11], 4
          %s173 = int_to_ptr.vmem [resolvable:$true] %s172
          %178 = dma.hbm_to_vmem [thread:$0]  %s171, 512, %s173, [#allocation10], 128, 128, 8
        $region20: #{tpu_custom_call.1} parent=11 // pred_fallthru
          _
      $region12: #{tpu_custom_call.1} parent=5 // pred_fallthru
        _
      %p179 = scmp.lt.s32.totalorder %s16, 2
      // Predicated region
      $region21: #{tpu_custom_call.1} parent=5 // pred_check
        %p180 = pneg %p179
      $region22: #{tpu_custom_call.1} parent=5 // pred_check_branch
        %182 = sbr.rel (%p180) target = $region24
      $region23: #{tpu_custom_call.1} parent=5 // pred_region
        // Predicated region
        $region25: #{tpu_custom_call.1} parent=23 // pred_check
          %p183 = pneg %p48
        $region26: #{tpu_custom_call.1} parent=23 // pred_check_branch
          %185 = sbr.rel (%p183) target = $region28
        $region27: #{tpu_custom_call.1} parent=23 // pred_region
          %s186 = sand.u32 %s38, 1
          %s187 = scalar_lea.sflag [#allocation7], %s186
          %s188 = sand.u32 %s38, 1
          %s189 = smul.addr %s188, 16
          %s190 = scalar_lea.vmem [#allocation6], %s189
          %s191 = smul.u32 2, %s23
          %s193 = ssub.s32 256, 256
          %194 = vsyncadd %s187, %s193
          %s195 = smul.addr %s191, 128
          %s196 = scalar_lea.hbm %s0, %s195
          %s197 = sshll.u32 %s190, 4
          %s198 = int_to_ptr.vmem [resolvable:$true] %s197
          %203 = dma.hbm_to_vmem [thread:$0]  %s196, 256, %s198, %s187, 128, 128, 8
        $region28: #{tpu_custom_call.1} parent=23 // pred_fallthru
          _
      $region24: #{tpu_custom_call.1} parent=5 // pred_fallthru
        _
      %p204 = scmp.le.s32.totalorder 1, %s16
      %p205 = scmp.lt.s32.totalorder %s16, 3
      %p206 = pnand %p204, %p205
      %p207 = pneg %p206
      // Predicated region
      $region29: #{tpu_custom_call.1} parent=5 // pred_check
        _
      $region30: #{tpu_custom_call.1} parent=5 // pred_check_branch
        %209 = sbr.rel (%p206) target = $region32
      $region31: #{tpu_custom_call.1} parent=5 // pred_region
        %s210 = ssub.s32 %s16, 1
        %s211 = sand.u32 %s41, 1
        %s212 = scalar_lea.sflag [#allocation7], %s211
        %s213 = sand.u32 %s41, 1
        %s214 = smul.addr %s213, 16
        %s215 = scalar_lea.vmem [#allocation6], %s214
        // Predicated region
        $region33: #{tpu_custom_call.1} parent=31 // pred_check
          %p216 = pneg %p54
        $region34: #{tpu_custom_call.1} parent=31 // pred_check_branch
          %218 = sbr.rel (%p216) target = $region36
        $region35: #{tpu_custom_call.1} parent=31 // pred_region
          %219 = dma.done %s212, 256
        $region36: #{tpu_custom_call.1} parent=31 // pred_fallthru
          _
        // Predicated region
        $region37: #{tpu_custom_call.1} parent=31 // pred_check
          %p220 = pneg %p80
        $region38: #{tpu_custom_call.1} parent=31 // pred_check_branch
          %222 = sbr.rel (%p220) target = $region40
        $region39: #{tpu_custom_call.1} parent=31 // pred_region
          %223 = dma.done [#allocation10], 512
        $region40: #{tpu_custom_call.1} parent=31 // pred_fallthru
          _
        // Predicated region
        $region41: #{tpu_custom_call.1} parent=31 // pred_check
          %p224 = pneg %p106
        $region42: #{tpu_custom_call.1} parent=31 // pred_check_branch
          %226 = sbr.rel (%p224) target = $region44
        $region43: #{tpu_custom_call.1} parent=31 // pred_region
          %227 = dma.done [#allocation10], 512
        $region44: #{tpu_custom_call.1} parent=31 // pred_fallthru
          _
        %s228 = sand.u32 %s41, 1
        %s229 = scalar_lea.sflag [#allocation7], %s228
        %s230 = sand.u32 %s41, 1
        %s231 = smul.addr %s230, 16
        %s232 = scalar_lea.vmem [#allocation6], %s231
        %p233 = pneg %p54
        %p234 = pneg %p51
        %p235 = pneg %p80
        %p236 = pneg %p77
        %p237 = pneg %p106
        %p238 = pneg %p103
        %p239 = pneg %p132
        %p240 = pneg %p129
        %s241 = sand.u32 %s119, 1
        %s242 = scalar_lea.sflag [#allocation8], %s241
        %s243 = sand.u32 %s119, 1
        %s244 = smul.addr %s243, 16
        %s245 = scalar_lea.vmem [#allocation12], %s244
        %s246 = smul.u32 2, %s25
        %s247 = smul.u32 4, %s26
        %s248 = smul.u32 4, %s26
        %s249 = smul.u32 2, %s25
        %p251 = scmp.eq.s32.totalorder %s26, 0
        // Predicated region
        $region45: #{tpu_custom_call.1} parent=31 // pred_check
          %p252 = pneg %p251
        $region46: #{tpu_custom_call.1} parent=31 // pred_check_branch
          %254 = sbr.rel (%p252) target = $region48
        $region47: #{tpu_custom_call.1} parent=31 // pred_region
          %v255 = vld [vmem:[%s215] sm:$0xff]
          %v256 = vld [vmem:[%s215 + $0x8] sm:$0xff]
          %v257 = vmul.f32 %v255, 0.125
          %v258 = vmul.f32 %v256, 0.125
          %v259 = vpack.c.bf16 %v258, %v257
          %vm260 = vcmask 523264
          %261 = vst.msk [vmem:[#allocation2] sm:$0xff] %vm260, %v259
          %vm262 = vcmask 7168
          %263 = vst.msk [vmem:[#allocation3] sm:$0xff] %vm262, -inf
          %264 = vst.msk [vmem:[#allocation3 + $0x8] sm:$0xff] %vm262, -inf
          %265 = vst.msk [vmem:[#allocation4] sm:$0xff] %vm262, 0.0
          %266 = vst.msk [vmem:[#allocation4 + $0x8] sm:$0xff] %vm262, 0.0
          %267 = vst.msk [vmem:[#allocation5] sm:$0xff] %vm260, 0.0
          %268 = vst.msk [vmem:[#allocation5 + $0x8] sm:$0xff] %vm260, 0.0
        $region48: #{tpu_custom_call.1} parent=31 // pred_fallthru
          _
        %v269 = vld [vmem:[#allocation2] sm:$0xff]
        %v270 = vld [vmem:[#allocation9] sm:$0xff]
        %v271 = vld [vmem:[#allocation9 + $0x8] sm:$0xff]
        %v272 = vld [vmem:[#allocation9 + $0x10] sm:$0xff]
        %v273 = vld [vmem:[#allocation9 + $0x18] sm:$0xff]
        %v274 = vpack.c.bf16 %v271, %v270
        %v275 = vpack.c.bf16 %v273, %v272
        %vm276 = vcmask 523264
        %v278 = vsel %vm276, %v269, 0
        %v281 = vsel %vm276, %v274, 0
        %v284 = vsel %vm276, %v275, 0
        %286 = vmatprep.subr.bf16.mxu0 0
        %287 = vmatpush1.bf16.xpose.msra.mxu0 %v281
        %288 = vmatprep.subr.bf16.mxu0 0
        %289 = vmatpush1.bf16.xpose.msra.mxu0 %v284
        %290 = vmatprep.subr.bf16.mxu0 0
        %291 = vmatpush1.bf16.xpose.msra.mxu0 0
        %292 = vmatprep.subr.bf16.mxu0 0
        %293 = vmatpush1.bf16.xpose.msra.mxu0 0
        %294 = vmatprep.subr.bf16.mxu0 0
        %295 = vmatpush1.bf16.xpose.msra.mxu0 0
        %296 = vmatprep.subr.bf16.mxu0 0
        %297 = vmatpush1.bf16.xpose.msra.mxu0 0
        %298 = vmatprep.subr.bf16.mxu0 0
        %299 = vmatpush1.bf16.xpose.msra.mxu0 0
        %300 = vmatprep.subr.bf16.mxu0 0
        %301 = vmatpush1.bf16.xpose.msra.mxu0 0
        %302 = vmatprep.subr.bf16.mxu0 0
        %303 = vmatpush1.bf16.xpose.msra.mxu0 0
        %304 = vmatprep.subr.bf16.mxu0 0
        %305 = vmatpush1.bf16.xpose.msra.mxu0 0
        %306 = vmatprep.subr.bf16.mxu0 0
        %307 = vmatpush1.bf16.xpose.msra.mxu0 0
        %308 = vmatprep.subr.bf16.mxu0 0
        %309 = vmatpush1.bf16.xpose.msra.mxu0 0
        %310 = vmatprep.subr.bf16.mxu0 0
        %311 = vmatpush1.bf16.xpose.msra.mxu0 0
        %312 = vmatprep.subr.bf16.mxu0 0
        %313 = vmatpush1.bf16.xpose.msra.mxu0 0
        %314 = vmatprep.subr.bf16.mxu0 0
        %315 = vmatpush1.bf16.xpose.msra.mxu0 0
        %316 = vmatprep.subr.bf16.mxu0 0
        %317 = vmatpush1.bf16.xpose.msra.mxu0 0
        %318 = vmatprep.mubr.bf16.mxu0 0
        %319 = vmatmul.mubr.bf16.gmra.mrb[0].mxu0 %v278
        %v320 = vpop.f32.mrb[0].mxu0
        %v321 = vadd.f32 0.0, %v320
        %v322 = vpop.f32.mrb[0].mxu0
        %v323 = vpop.f32.mrb[0].mxu0
        %v324 = vadd.f32 0.0, %v323
        %v325 = vpop.f32.mrb[0].mxu0
        %326 = vdwg.mxu0
        %v327 = vld [vmem:[#allocation3] sm:$0xff]
        %v328 = vld [vmem:[#allocation3 + $0x8] sm:$0xff]
        %vm329 = vcmask 261120
        %v330 = vsel %vm329, %v321, -inf
        %331 = vmax.xlane.f32.xlu0 %v330
        %v332 = vpop.xlane.xlu0 %331
        %v333 = vsel %vm329, %v324, -inf
        %334 = vmax.xlane.f32.xlu0 %v333
        %v335 = vpop.xlane.xlu0 %334
        %v336 = vmax.f32 %v327, %v332
        %v337 = vmax.f32 %v328, %v335
        %v338 = vsub.f32 %v327, %v336
        %v339 = vsub.f32 %v328, %v337
        %v340 = vmul.f32 %v338, 1.442695
        %v341 = vpow.pop %v340
        %v342 = vmul.f32 %v339, 1.442695
        %v343 = vpow.pop %v342
        %345 = vset.pattern.permute.xlu0 0
        %346 = vperm.xlu0 %345, %v336
        %v347 = vpop.permute.xlu0 %346
        %350 = vset.pattern.permute.xlu0 0
        %351 = vperm.xlu0 %350, %v337
        %v352 = vpop.permute.xlu0 %351
        %v354 = vsub.f32 %v321, %v347
        %v355 = vsub.f32 %v324, %v352
        %v356 = vmul.f32 %v354, 1.442695
        %v357 = vpow.pop %v356
        %v358 = vmul.f32 %v355, 1.442695
        %v359 = vpow.pop %v358
        %v360 = vld [vmem:[#allocation4] sm:$0xff]
        %v361 = vld [vmem:[#allocation4 + $0x8] sm:$0xff]
        %v362 = vmul.f32 %v341, %v360
        %v363 = vmul.f32 %v343, %v361
        %v364 = vsel %vm329, %v357, 0.0
        %365 = vadd.xlane.f32.xlu0 %v364
        %v366 = vpop.xlane.xlu0 %365
        %v367 = vsel %vm329, %v359, 0.0
        %368 = vadd.xlane.f32.xlu0 %v367
        %v369 = vpop.xlane.xlu0 %368
        %v370 = vadd.f32 %v362, %v366
        %v371 = vadd.f32 %v363, %v369
        %vm372 = vcmask 7168
        %373 = vst.msk [vmem:[#allocation4] sm:$0xff] %vm372, %v370
        %374 = vst.msk [vmem:[#allocation4 + $0x8] sm:$0xff] %vm372, %v371
        %v375 = vld [vmem:[#allocation5] sm:$0xff]
        %v376 = vld [vmem:[#allocation5 + $0x8] sm:$0xff]
        %378 = vset.pattern.permute.xlu0 0
        %379 = vperm.xlu0 %378, %v341
        %v380 = vpop.permute.xlu0 %379
        %383 = vset.pattern.permute.xlu0 0
        %384 = vperm.xlu0 %383, %v343
        %v385 = vpop.permute.xlu0 %384
        %v387 = vmul.f32 %v380, %v375
        %v388 = vmul.f32 %v385, %v376
        %v389 = vpack.c.bf16 %v359, %v357
        %v390 = vld [vmem:[#allocation11] sm:$0xff]
        %v391 = vld [vmem:[#allocation11 + $0x8] sm:$0xff]
        %v392 = vld [vmem:[#allocation11 + $0x10] sm:$0xff]
        %v393 = vld [vmem:[#allocation11 + $0x18] sm:$0xff]
        %v394 = vpack.c.bf16 %v391, %v390
        %v395 = vpack.c.bf16 %v393, %v392
        %v397 = vsel %vm329, %v389, 0
        %399 = vmatprep.subr.bf16.mxu0 0
        %400 = vmatpush1.bf16.msra.mxu0 %v394
        %401 = vmatprep.subr.bf16.mxu0 0
        %402 = vmatpush1.bf16.msra.mxu0 %v395
        %403 = vmatprep.subr.bf16.mxu0 0
        %404 = vmatpush1.bf16.msra.mxu0 0
        %405 = vmatprep.subr.bf16.mxu0 0
        %406 = vmatpush1.bf16.msra.mxu0 0
        %407 = vmatprep.subr.bf16.mxu0 0
        %408 = vmatpush1.bf16.msra.mxu0 0
        %409 = vmatprep.subr.bf16.mxu0 0
        %410 = vmatpush1.bf16.msra.mxu0 0
        %411 = vmatprep.subr.bf16.mxu0 0
        %412 = vmatpush1.bf16.msra.mxu0 0
        %413 = vmatprep.subr.bf16.mxu0 0
        %414 = vmatpush1.bf16.msra.mxu0 0
        %415 = vmatprep.subr.bf16.mxu0 0
        %416 = vmatpush1.bf16.msra.mxu0 0
        %417 = vmatprep.subr.bf16.mxu0 0
        %418 = vmatpush1.bf16.msra.mxu0 0
        %419 = vmatprep.subr.bf16.mxu0 0
        %420 = vmatpush1.bf16.msra.mxu0 0
        %421 = vmatprep.subr.bf16.mxu0 0
        %422 = vmatpush1.bf16.msra.mxu0 0
        %423 = vmatprep.subr.bf16.mxu0 0
        %424 = vmatpush1.bf16.msra.mxu0 0
        %425 = vmatprep.subr.bf16.mxu0 0
        %426 = vmatpush1.bf16.msra.mxu0 0
        %427 = vmatprep.subr.bf16.mxu0 0
        %428 = vmatpush1.bf16.msra.mxu0 0
        %429 = vmatprep.subr.bf16.mxu0 0
        %430 = vmatpush1.bf16.msra.mxu0 0
        %431 = vmatprep.mubr.bf16.mxu0 0
        %432 = vmatmul.mubr.bf16.gmra.mrb[0].mxu0 %v397
        %v433 = vpop.f32.mrb[0].mxu0
        %v434 = vadd.f32 0.0, %v433
        %v435 = vpop.f32.mrb[0].mxu0
        %v436 = vpop.f32.mrb[0].mxu0
        %v437 = vadd.f32 0.0, %v436
        %v438 = vpop.f32.mrb[0].mxu0
        %439 = vdwg.mxu0
        %v440 = vadd.f32 %v387, %v434
        %v441 = vadd.f32 %v388, %v437
        %442 = vst.msk [vmem:[#allocation5] sm:$0xff] %vm276, %v440
        %443 = vst.msk [vmem:[#allocation5 + $0x8] sm:$0xff] %vm276, %v441
        %444 = vst.msk [vmem:[#allocation3] sm:$0xff] %vm372, %v336
        %445 = vst.msk [vmem:[#allocation3 + $0x8] sm:$0xff] %vm372, %v337
        // Predicated region
        $region49: #{tpu_custom_call.1} parent=31 // pred_check
          %p446 = pneg %p251
        $region50: #{tpu_custom_call.1} parent=31 // pred_check_branch
          %448 = sbr.rel (%p446) target = $region52
        $region51: #{tpu_custom_call.1} parent=31 // pred_region
          %v449 = vld [vmem:[#allocation5] sm:$0xff]
          %v450 = vld [vmem:[#allocation5 + $0x8] sm:$0xff]
          %v451 = vld [vmem:[#allocation4] sm:$0xff]
          %v452 = vld [vmem:[#allocation4 + $0x8] sm:$0xff]
          %454 = vset.pattern.permute.xlu0 0
          %455 = vperm.xlu0 %454, %v451
          %v456 = vpop.permute.xlu0 %455
          %459 = vset.pattern.permute.xlu0 0
          %460 = vperm.xlu0 %459, %v452
          %v461 = vpop.permute.xlu0 %460
          %v463 = vrcp.pop %v456
          %v464 = vmul.f32 %v449, %v463
          %v465 = vrcp.pop %v461
          %v466 = vmul.f32 %v450, %v465
          %467 = vst.msk [vmem:[%s245] sm:$0xff] %vm276, %v464
          %468 = vst.msk [vmem:[%s245 + $0x8] sm:$0xff] %vm276, %v466
        $region52: #{tpu_custom_call.1} parent=31 // pred_fallthru
          _
        %s469 = sand.u32 %s119, 1
        %s470 = scalar_lea.sflag [#allocation8], %s469
        %s471 = sand.u32 %s119, 1
        %s472 = smul.addr %s471, 16
        %s473 = scalar_lea.vmem [#allocation12], %s472
        // Predicated region
        $region53: #{tpu_custom_call.1} parent=31 // pred_check
          %p474 = pneg %p129
        $region54: #{tpu_custom_call.1} parent=31 // pred_check_branch
          %476 = sbr.rel (%p474) target = $region56
        $region55: #{tpu_custom_call.1} parent=31 // pred_region
          %s477 = smul.u32 2, %s25
          %s479 = ssub.s32 256, 256
          %480 = vsyncadd %s470, %s479
          %s481 = smul.addr %s477, 128
          %s482 = scalar_lea.hbm %s3, %s481
          %s483 = sshll.u32 %s473, 4
          %s484 = int_to_ptr.vmem [resolvable:$true] %s483
          %489 = dma.vmem_to_hbm [thread:$0]  %s484, 256, %s482, %s470, 128, 128, 8
        $region56: #{tpu_custom_call.1} parent=31 // pred_fallthru
          _
      $region32: #{tpu_custom_call.1} parent=5 // pred_fallthru
        _
      %p490 = scmp.le.s32.totalorder 2, %s16
      // Predicated region
      $region57: #{tpu_custom_call.1} parent=5 // pred_check
        %p491 = pneg %p490
      $region58: #{tpu_custom_call.1} parent=5 // pred_check_branch
        %493 = sbr.rel (%p491) target = $region60
      $region59: #{tpu_custom_call.1} parent=5 // pred_region
        %s494 = ssub.s32 %s16, 2
        // Predicated region
        $region61: #{tpu_custom_call.1} parent=59 // pred_check
          %p495 = pneg %p135
        $region62: #{tpu_custom_call.1} parent=59 // pred_check_branch
          %497 = sbr.rel (%p495) target = $region64
        $region63: #{tpu_custom_call.1} parent=59 // pred_region
          %s498 = sand.u32 %s120, 1
          %s499 = scalar_lea.sflag [#allocation8], %s498
          %s500 = sand.u32 %s120, 1
          %s501 = smul.addr %s500, 16
          %s502 = scalar_lea.vmem [#allocation12], %s501
          %503 = dma.done %s499, 256
        $region64: #{tpu_custom_call.1} parent=59 // pred_fallthru
          _
      $region60: #{tpu_custom_call.1} parent=5 // pred_fallthru
        _
    $region6: #{tpu_custom_call.1} parent=1 // loop_footer
      %s20 = sadd.s32 1, %s16
    $region7: #{tpu_custom_call.1} parent=1 // loop_footer_branch
      %15 = sbr.rel target = $region3
    $region8: #{tpu_custom_call.1} parent=1 // loop_exit
      _
    %504 = vsyncpa [#allocation7], 1
    %s505 = scalar_lea.sflag [#allocation7], 1
    %506 = vsyncpa %s505, 1
    %507 = vsyncpa [#allocation10], 1
    %508 = vsyncpa [#allocation8], 1
    %s509 = scalar_lea.sflag [#allocation8], 1
    %510 = vsyncpa %s509, 1

</llo_original>
